<compile_context>
chip_gen: v7x
topology: tpu7x:2x2x1
jax: 0.10.0
libtpu: 0.0.40
codegen_flags: <defaults>
</compile_context>

<pallas_src>
import functools

import jax
import jax.numpy as jnp
from jax.experimental import pallas as pl
from jax.experimental.pallas import tpu as pltpu

_LANE = 128


def _round_up(x, m):
    return ((x + m - 1) // m) * m


def _largest_divisor_multiple(n, unit, cap):
    """Largest d <= cap with d % unit == 0 and n % d == 0 (assumes n % unit == 0)."""
    d = min(n, (cap // unit) * unit)
    while d > unit:
        if n % d == 0:
            return d
        d -= unit
    return unit


def _linear_bias_kernel(x_ref, w_ref, b_ref, o_ref, acc_ref):
    """One (tm, tn) output tile; grid = (M, N, K) blocks with K innermost."""
    k = pl.program_id(2)

    @pl.when(k == 0)
    def _():
        # Init accumulator with the broadcast bias -> epilogue is just cast+store.
        acc_ref[...] = jnp.broadcast_to(
            b_ref[...].astype(jnp.float32), acc_ref.shape
        )

    acc_ref[...] += jnp.dot(
        x_ref[...], w_ref[...], preferred_element_type=jnp.float32
    )

    @pl.when(k == pl.num_programs(2) - 1)
    def _():
        o_ref[...] = acc_ref[...].astype(o_ref.dtype)


def prepare_params(weight, bias, *, compute_dtype=jnp.bfloat16):
    """One-time parameter prep (NOT per forward call).

    weight: (D_out_total, D_in) PyTorch layout; bias: (D_out_total,).
    Returns (w_t, b): w_t is (K_pad, N_pad) in the MXU compute dtype (bf16),
    zero-padded to lane (128) multiples; b is (1, N_pad) kept in f32 (tiny).
    """
    d_out, d_in = weight.shape
    k_pad = _round_up(d_in, _LANE)
    n_pad = _round_up(d_out, _LANE)
    w_t = jnp.asarray(weight).T.astype(compute_dtype)
    w_t = jnp.pad(w_t, ((0, k_pad - d_in), (0, n_pad - d_out)))
    b = jnp.asarray(bias).astype(jnp.float32).reshape(1, d_out)
    b = jnp.pad(b, ((0, 0), (0, n_pad - d_out)))
    return w_t, b


def _pick_tiles(batch, k_pad, n_pad, compute_dtype):
    sub = 8 if jnp.dtype(compute_dtype).itemsize >= 4 else 16

    # M: minimize padded rows; allow up to 512 rows/tile so W is re-streamed
    # from HBM as few times as possible for large batches.
    b0 = _round_up(batch, sub)
    if b0 <= 512:
        tm, b_pad = b0, b0
    else:
        tm, b_pad = None, None
        t = (512 // sub) * sub
        while t >= sub:
            pad = _round_up(batch, t)
            if b_pad is None or pad < b_pad:
                tm, b_pad = t, pad
            t -= sub

    # K: one reduction step whenever the whole (128-padded) K fits comfortably
    # (removes accumulator revisits and the per-tile prologue/epilogue); else
    # the largest 128-multiple divisor of k_pad up to 1024.
    tk = k_pad if k_pad <= 2048 else _largest_divisor_multiple(k_pad, _LANE, 1024)

    # N: whole (already 128-padded) output width per tile, capped at 1024.
    tn = n_pad if n_pad <= 1024 else _largest_divisor_multiple(n_pad, _LANE, 1024)

    # Megacore / v7x: a 1x1 parallel grid leaves the second TensorCore idle;
    # split N when it is wide enough.
    if b_pad // tm == 1 and n_pad // tn == 1 and n_pad >= 2 * _LANE:
        tn = _largest_divisor_multiple(n_pad, _LANE, n_pad // 2)
    # TODO(synk): for tiny-N / very-large-K shapes a K-parallel split with
    # per-core partial accumulators + a small reduce would engage both v7x TCs.
    return tm, tn, tk, b_pad


def _vmem_limit_bytes(tm, tn, tk, compute_dtype, out_dtype):
    c = jnp.dtype(compute_dtype).itemsize
    o = jnp.dtype(out_dtype).itemsize
    # double-buffered x/w tiles + bias, double-buffered output tile, f32 acc
    live = 2 * c * (tm * tk + tk * tn) + 2 * 4 * tn + 2 * o * tm * tn + 4 * tm * tn
    want = max(int(live * 1.5), 16 << 20)
    try:
        # Generation-aware ceiling: ~128 MiB physical on v5e/v6e, 64 MiB on v7x.
        cap = int(pltpu.get_tpu_info().vmem_capacity_bytes)
    except Exception:
        cap = 64 << 20  # conservative (v7x)
    return min(want, (cap * 3) // 4)  # headroom for compiler scratch


@functools.partial(jax.jit, static_argnames=("output_dims",))
def multi_head_classifier_fwd(x, w_t, b, output_dims):
    """x: (B, D_in); w_t: (K_pad, N_pad) pre-padded bf16 from prepare_params;
    b: (1, N_pad) f32.  Returns tuple of arrays split along axis=1 with sizes
    `output_dims`, matching torch.split(linear(x), output_dims, dim=1)."""
    batch, d_in = x.shape
    k_pad, n_pad = w_t.shape
    d_out = sum(output_dims)
    out_dtype = x.dtype
    compute_dtype = w_t.dtype

    tm, tn, tk, b_pad = _pick_tiles(batch, k_pad, n_pad, compute_dtype)

    # Per-call prep: only the activations are cast/padded (weights are already
    # padded + bf16 from prepare_params; zero K-padding contributes nothing).
    x = x.astype(compute_dtype)
    if (b_pad, k_pad) != (batch, d_in):
        x = jnp.pad(x, ((0, b_pad - batch), (0, k_pad - d_in)))

    grid = (b_pad // tm, n_pad // tn, k_pad // tk)

    c_item = jnp.dtype(compute_dtype).itemsize
    flops = 2 * b_pad * k_pad * n_pad
    bytes_accessed = (
        c_item * (b_pad * k_pad + k_pad * n_pad)
        + 4 * n_pad
        + jnp.dtype(out_dtype).itemsize * b_pad * n_pad
    )

    out = pl.pallas_call(
        _linear_bias_kernel,
        out_shape=jax.ShapeDtypeStruct((b_pad, n_pad), out_dtype),
        grid_spec=pltpu.PrefetchScalarGridSpec(
            num_scalar_prefetch=0,
            grid=grid,
            in_specs=[
                pl.BlockSpec((tm, tk), lambda i, j, k: (i, k)),
                # v7x note: tiles are sized large enough to amortize the
                # ~0.35us grid-step cost; for many tiny weight tiles,
                # pipeline_mode=pl.Buffered(3) on this spec would deepen
                # buffering instead.
                pl.BlockSpec((tk, tn), lambda i, j, k: (k, j)),
                pl.BlockSpec((1, tn), lambda i, j, k: (0, j)),
            ],
            out_specs=pl.BlockSpec((tm, tn), lambda i, j, k: (i, j)),
            scratch_shapes=[pltpu.VMEM((tm, tn), jnp.float32)],
        ),
        compiler_params=pltpu.CompilerParams(
            dimension_semantics=("parallel", "parallel", "arbitrary"),
            vmem_limit_bytes=_vmem_limit_bytes(tm, tn, tk, compute_dtype, out_dtype),
        ),
        cost_estimate=pl.CostEstimate(
            flops=flops, transcendentals=0, bytes_accessed=bytes_accessed
        ),
    )(x, w_t, b)

    # Drop alignment padding, then torch.split(dim=1) as lazy slices (fused by
    # XLA inside the enclosing jit; no per-head masked-lane pallas outputs).
    if b_pad != batch or n_pad != d_out:
        out = out[:batch, :d_out]
    splits = []
    start = 0
    for d in output_dims:
        splits.append(jax.lax.slice_in_dim(out, start, start + d, axis=1))
        start += d
    return tuple(splits)


def init_params(key, input_dim, output_dims, dtype=jnp.float32):
    """Deterministic init matching nn.Linear(input_dim, sum(output_dims))."""
    total = sum(output_dims)
    k_w, k_b = jax.random.split(key)
    bound = 1.0 / (input_dim ** 0.5)
    weight = jax.random.uniform(k_w, (total, input_dim), dtype, -bound, bound)
    bias = jax.random.uniform(k_b, (total,), dtype, -bound, bound)
    return weight, bias


def _check(x, weight, bias, output_dims, atol=1e-3):
    w_t, b = prepare_params(weight, bias)
    outs = jax.block_until_ready(
        multi_head_classifier_fwd(x, w_t, b, tuple(output_dims))
    )
    # Reference uses the same bf16-quantized operands with f32 accumulation.
    xf = x.astype(jnp.bfloat16).astype(jnp.float32)
    wf = weight.T.astype(jnp.bfloat16).astype(jnp.float32)
    ref = (
        jnp.dot(xf, wf, precision=jax.lax.Precision.HIGHEST)
        + bias.astype(jnp.float32)[None, :]
    )
    start = 0
    for o, d in zip(outs, output_dims):
        assert o.shape == (x.shape[0], d), o.shape
        assert o.dtype == x.dtype, o.dtype
        assert jnp.allclose(
            o.astype(jnp.float32), ref[:, start:start + d], atol=atol, rtol=1e-3
        ), f"mismatch in head of size {d}"
        start += d


if __name__ == "__main__":
    key = jax.random.PRNGKey(0)
    k1, k2, k3, k4, k5, k6 = jax.random.split(key, 6)

    # Small, module-default-like case: single-tile grid.
    x = jax.random.normal(k1, (8, 32), jnp.float32)
    w, b = init_params(k2, 32, (4, 8, 4))
    _check(x, w, b, (4, 8, 4))

    # Irregular head sizes, full-K single reduction step, N split into 2 blocks
    # (keeps both v7x TensorCores busy).
    x2 = jax.random.normal(k3, (16, 1024), jnp.float32)
    w2, b2 = init_params(k4, 1024, (100, 156))
    _check(x2, w2, b2, (100, 156))

    # Awkward batch + K > 2048: exercises the multi-step K reduction (bias-init
    # prologue / cast-store epilogue across k) and row padding.
    x3 = jax.random.normal(k5, (132, 2560), jnp.float32)
    w3, b3 = init_params(k6, 2560, (32, 64))
    _check(x3, w3, b3, (32, 64))

    print("KERNEL_OK")
</pallas_src>

<mosaic_0001>
module attributes {stable_mosaic.version = 11 : i64} {
  func.func @_linear_bias_kernel(%arg0: i32, %arg1: i32, %arg2: i32, %arg3: memref<16x128xbf16, #tpu.memory_space<vmem>>, %arg4: memref<128x128xbf16, #tpu.memory_space<vmem>>, %arg5: memref<1x128xf32, #tpu.memory_space<vmem>>, %arg6: memref<16x128xf32, #tpu.memory_space<vmem>>, %arg7: memref<16x128xf32, #tpu.memory_space<vmem>>) attributes {dimension_semantics = [#tpu.dimension_semantics<parallel>, #tpu.dimension_semantics<parallel>, #tpu.dimension_semantics<arbitrary>], iteration_bounds = array<i64: 1, 1, 1>, scalar_prefetch = 0 : i64, scratch_operands = 1 : i64, tpu.core_type = #tpu.core_type<tc>, window_params = [{transform_indices = @transform_0, window_bounds = array<i64: 16, 128>}, {transform_indices = @transform_1, window_bounds = array<i64: 128, 128>}, {transform_indices = @transform_2, window_bounds = array<i64: 1, 128>}, {transform_indices = @transform_3, window_bounds = array<i64: 16, 128>}]} {
    %c0_i32 = arith.constant 0 : i32
    %0 = arith.cmpi eq, %arg2, %c0_i32 : i32
    %1 = arith.extui %0 : i1 to i32
    %c0_i32_0 = arith.constant 0 : i32
    %2 = arith.cmpi ne, %1, %c0_i32_0 : i32
    scf.if %2 {
      %c0_10 = arith.constant 0 : index
      %c0_11 = arith.constant 0 : index
      %12 = vector.load %arg5[%c0_10, %c0_11] : memref<1x128xf32, #tpu.memory_space<vmem>>, vector<1x128xf32>
      %13 = vector.shape_cast %12 : vector<1x128xf32> to vector<1x128xf32>
      %14 = vector.broadcast %13 : vector<1x128xf32> to vector<16x128xf32>
      %c0_12 = arith.constant 0 : index
      %c0_13 = arith.constant 0 : index
      %15 = vector.load %arg7[%c0_12, %c0_13] : memref<16x128xf32, #tpu.memory_space<vmem>>, vector<16x128xf32>
      tpu.vector_store %arg7[%c0_12, %c0_13], %14 {strides = array<i32>} : memref<16x128xf32, #tpu.memory_space<vmem>>, vector<16x128xf32>,
    } else {
    }
    %c0 = arith.constant 0 : index
    %c0_1 = arith.constant 0 : index
    %3 = vector.load %arg7[%c0, %c0_1] : memref<16x128xf32, #tpu.memory_space<vmem>>, vector<16x128xf32>
    %c0_2 = arith.constant 0 : index
    %c0_3 = arith.constant 0 : index
    %4 = vector.load %arg3[%c0_2, %c0_3] : memref<16x128xbf16, #tpu.memory_space<vmem>>, vector<16x128xbf16>
    %c0_4 = arith.constant 0 : index
    %c0_5 = arith.constant 0 : index
    %5 = vector.load %arg4[%c0_4, %c0_5] : memref<128x128xbf16, #tpu.memory_space<vmem>>, vector<128x128xbf16>
    %cst = arith.constant dense<0.000000e+00> : vector<16x128xf32>
    %6 = tpu.matmul %4, %5, %cst {dimension_numbers = #tpu.dot_dimension_numbers<[1], [0], [0], [1], [0, 0, 1, 1], [], []>} : vector<16x128xbf16>, vector<128x128xbf16>, vector<16x128xf32> -> vector<16x128xf32>
    %7 = arith.addf %3, %6 : vector<16x128xf32>
    %c0_6 = arith.constant 0 : index
    %c0_7 = arith.constant 0 : index
    %8 = vector.load %arg7[%c0_6, %c0_7] : memref<16x128xf32, #tpu.memory_space<vmem>>, vector<16x128xf32>
    tpu.vector_store %arg7[%c0_6, %c0_7], %7 {strides = array<i32>} : memref<16x128xf32, #tpu.memory_space<vmem>>, vector<16x128xf32>,
    %c0_i32_8 = arith.constant 0 : i32
    %9 = arith.cmpi eq, %arg2, %c0_i32_8 : i32
    %10 = arith.extui %9 : i1 to i32
    %c0_i32_9 = arith.constant 0 : i32
    %11 = arith.cmpi ne, %10, %c0_i32_9 : i32
    scf.if %11 {
      %c0_10 = arith.constant 0 : index
      %c0_11 = arith.constant 0 : index
      %12 = vector.load %arg7[%c0_10, %c0_11] : memref<16x128xf32, #tpu.memory_space<vmem>>, vector<16x128xf32>
      %c0_12 = arith.constant 0 : index
      %c0_13 = arith.constant 0 : index
      %13 = vector.load %arg6[%c0_12, %c0_13] : memref<16x128xf32, #tpu.memory_space<vmem>>, vector<16x128xf32>
      tpu.vector_store %arg6[%c0_12, %c0_13], %12 {strides = array<i32>} : memref<16x128xf32, #tpu.memory_space<vmem>>, vector<16x128xf32>,
    } else {
    }
    return
  }
  func.func @transform_0(%arg0: i32, %arg1: i32, %arg2: i32) -> (i32, i32) {
    %c0_i32 = arith.constant 0 : i32
    return %arg0, %arg2 : i32, i32
  }
  func.func @transform_1(%arg0: i32, %arg1: i32, %arg2: i32) -> (i32, i32) {
    %c0_i32 = arith.constant 0 : i32
    return %arg2, %arg1 : i32, i32
  }
  func.func @transform_2(%arg0: i32, %arg1: i32, %arg2: i32) -> (i32, i32) {
    %c0_i32 = arith.constant 0 : i32
    %c0_i32_0 = arith.constant 0 : i32
    return %c0_i32, %arg1 : i32, i32
  }
  func.func @transform_3(%arg0: i32, %arg1: i32, %arg2: i32) -> (i32, i32) {
    %c0_i32 = arith.constant 0 : i32
    return %arg0, %arg1 : i32, i32
  }
}

</mosaic_0001>

<llo_original>
// kernel: multi_head_classifier_fwd.1
$region0: #{multi_head_classifier_fwd.1}
  #allocation0 [shape = 'u32[]', space=smem, size = 0x4, offset = 0x4, fixed_abs, tag = 'smem constant byte address 0x4 - core index']
  #allocation1 [shape = 'u32[144,128]{1,0:T(1,128)}', space=vmem, size = 0x12000, scoped, tag = 'internal scratch']
  #allocation2 [shape = 'f32[16,128]{1,0:T(8,128)}', space=vmem, size = 0x2000, scoped, tag = 'scratch operand']
  %s0 = inlined_call_operand.vmem [shape: bf16[16,128], index: 0, kind: input, shape index: {}]
  %s1 = inlined_call_operand.hbm [shape: bf16[128,128], index: 1, kind: input, shape index: {}]
  %s2 = inlined_call_operand.vmem [shape: f32[1,128], index: 2, kind: input, shape index: {}]
  %s3 = inlined_call_operand.vmem [shape: f32[16,128], index: 3, kind: output, shape index: {}]
  %s4 = sld [smem:[#allocation0]]
  $region34: #{multi_head_classifier_fwd.1} parent=0
    _
  %s6 = ssub.s32 1, %s4
  %s7 = scalar_select 0, %s6, %s4
  $region1: #{multi_head_classifier_fwd.1} parent=0
    #allocation3 [shape = 'u8[32768]{0}', space=vmem, size = 0x8000, scoped, tag = 'input window, operand 1, single buffered']
    #allocation4 [shape = 's32[1]{0}', space=sflag, size = 0x4, scoped, tag = 'scoped memory for multi_head_classifier_fwd.1']
    %8 = vsyncpa [#allocation4], 0
    // Predicated region
    $region2: #{multi_head_classifier_fwd.1} parent=1 // pred_check
      _
    $region3: #{multi_head_classifier_fwd.1} parent=1 // pred_check_branch
      %10 = sbr.rel (0) target = $region5
    $region4: #{multi_head_classifier_fwd.1} parent=1 // pred_region
      _
    $region5: #{multi_head_classifier_fwd.1} parent=1 // pred_fallthru
      _
    // Predicated region
    $region6: #{multi_head_classifier_fwd.1} parent=1 // pred_check
      _
    $region7: #{multi_head_classifier_fwd.1} parent=1 // pred_check_branch
      %12 = sbr.rel (0) target = $region9
    $region8: #{multi_head_classifier_fwd.1} parent=1 // pred_region
      %s14 = ssub.s32 1024, 1024
      %15 = vsyncadd [#allocation4], %s14
      %s16 = sshll.u32 [#allocation3], 4
      %s17 = int_to_ptr.vmem [resolvable:$true] %s16
      %22 = dma.hbm_to_vmem [thread:$0]  %s1, 1024, %s17, [#allocation4], 64, 64, 4
    $region9: #{multi_head_classifier_fwd.1} parent=1 // pred_fallthru
      _
    // Predicated region
    $region10: #{multi_head_classifier_fwd.1} parent=1 // pred_check
      _
    $region11: #{multi_head_classifier_fwd.1} parent=1 // pred_check_branch
      %24 = sbr.rel (0) target = $region13
    $region12: #{multi_head_classifier_fwd.1} parent=1 // pred_region
      _
    $region13: #{multi_head_classifier_fwd.1} parent=1 // pred_fallthru
      _
    // Predicated region
    $region14: #{multi_head_classifier_fwd.1} parent=1 // pred_check
      _
    $region15: #{multi_head_classifier_fwd.1} parent=1 // pred_check_branch
      %26 = sbr.rel (0) target = $region17
    $region16: #{multi_head_classifier_fwd.1} parent=1 // pred_region
      %27 = dma.done [#allocation4], 1024
    $region17: #{multi_head_classifier_fwd.1} parent=1 // pred_fallthru
      _
    %p29 = scmp.eq.s32.totalorder 0, 0
    // Predicated region
    $region18: #{multi_head_classifier_fwd.1} parent=1 // pred_check
      %p30 = pneg %p29
    $region19: #{multi_head_classifier_fwd.1} parent=1 // pred_check_branch
      %32 = sbr.rel (%p30) target = $region21
    $region20: #{multi_head_classifier_fwd.1} parent=1 // pred_region
      %v33 = vld [vmem:[%s2] sm:$0x1]
      %v35 = vlaneseq
      %v36 = vshrl.u32 %v35, 7
      %v37 = vsub.s32 0, %v36
      %v38 = vrot.slane %v33, %v37
      %40 = vst [vmem:[#allocation2] sm:$0xff] %v38
      %41 = vst [vmem:[#allocation2 + $0x8] sm:$0xff] %v38
    $region21: #{multi_head_classifier_fwd.1} parent=1 // pred_fallthru
      _
    %v42 = vld [vmem:[#allocation2] sm:$0xff]
    %v43 = vld [vmem:[#allocation2 + $0x8] sm:$0xff]
    %v44 = vld [vmem:[%s0] sm:$0xf]
    %v45 = vld [vmem:[%s0 + $0x4] sm:$0xf]
    %v46 = vld [vmem:[#allocation3] sm:$0xf]
    %v47 = vld [vmem:[#allocation3 + $0x4] sm:$0xf]
    %v48 = vld [vmem:[#allocation3 + $0x8] sm:$0xf]
    %v49 = vld [vmem:[#allocation3 + $0xc] sm:$0xf]
    %v50 = vld [vmem:[#allocation3 + $0x10] sm:$0xf]
    %v51 = vld [vmem:[#allocation3 + $0x14] sm:$0xf]
    %v52 = vld [vmem:[#allocation3 + $0x18] sm:$0xf]
    %v53 = vld [vmem:[#allocation3 + $0x1c] sm:$0xf]
    %v54 = vld [vmem:[#allocation3 + $0x20] sm:$0xf]
    %v55 = vld [vmem:[#allocation3 + $0x24] sm:$0xf]
    %v56 = vld [vmem:[#allocation3 + $0x28] sm:$0xf]
    %v57 = vld [vmem:[#allocation3 + $0x2c] sm:$0xf]
    %v58 = vld [vmem:[#allocation3 + $0x30] sm:$0xf]
    %v59 = vld [vmem:[#allocation3 + $0x34] sm:$0xf]
    %v60 = vld [vmem:[#allocation3 + $0x38] sm:$0xf]
    %v61 = vld [vmem:[#allocation3 + $0x3c] sm:$0xf]
    %v64 = vunpack.c.l.b16 %v44
    %v65 = vunpack.c.l.b16 %v45
    %v66 = vpack.c.b16 %v65, %v64
    %v84 = vunpack.c.l.b16 %v46
    %v85 = vunpack.c.l.b16 %v47
    %v86 = vunpack.c.l.b16 %v48
    %v87 = vunpack.c.l.b16 %v49
    %v88 = vunpack.c.l.b16 %v50
    %v89 = vunpack.c.l.b16 %v51
    %v90 = vunpack.c.l.b16 %v52
    %v91 = vunpack.c.l.b16 %v53
    %v92 = vunpack.c.l.b16 %v54
    %v93 = vunpack.c.l.b16 %v55
    %v94 = vunpack.c.l.b16 %v56
    %v95 = vunpack.c.l.b16 %v57
    %v96 = vunpack.c.l.b16 %v58
    %v97 = vunpack.c.l.b16 %v59
    %v98 = vunpack.c.l.b16 %v60
    %v99 = vunpack.c.l.b16 %v61
    %v100 = vpack.c.b16 %v85, %v84
    %v101 = vpack.c.b16 %v87, %v86
    %v102 = vpack.c.b16 %v89, %v88
    %v103 = vpack.c.b16 %v91, %v90
    %v104 = vpack.c.b16 %v93, %v92
    %v105 = vpack.c.b16 %v95, %v94
    %v106 = vpack.c.b16 %v97, %v96
    %v107 = vpack.c.b16 %v99, %v98
    %116 = vmatprep.subr.bf16.mxu0 0
    %117 = vmatpush1.bf16.msra.mxu0 %v100
    %118 = vmatprep.subr.bf16.mxu0 0
    %119 = vmatpush1.bf16.msra.mxu0 %v101
    %120 = vmatprep.subr.bf16.mxu0 0
    %121 = vmatpush1.bf16.msra.mxu0 %v102
    %122 = vmatprep.subr.bf16.mxu0 0
    %123 = vmatpush1.bf16.msra.mxu0 %v103
    %124 = vmatprep.subr.bf16.mxu0 0
    %125 = vmatpush1.bf16.msra.mxu0 %v104
    %126 = vmatprep.subr.bf16.mxu0 0
    %127 = vmatpush1.bf16.msra.mxu0 %v105
    %128 = vmatprep.subr.bf16.mxu0 0
    %129 = vmatpush1.bf16.msra.mxu0 %v106
    %130 = vmatprep.subr.bf16.mxu0 0
    %131 = vmatpush1.bf16.msra.mxu0 %v107
    %132 = vmatprep.subr.bf16.mxu0 0
    %133 = vmatpush1.bf16.msra.mxu0 0
    %134 = vmatprep.subr.bf16.mxu0 0
    %135 = vmatpush1.bf16.msra.mxu0 0
    %136 = vmatprep.subr.bf16.mxu0 0
    %137 = vmatpush1.bf16.msra.mxu0 0
    %138 = vmatprep.subr.bf16.mxu0 0
    %139 = vmatpush1.bf16.msra.mxu0 0
    %140 = vmatprep.subr.bf16.mxu0 0
    %141 = vmatpush1.bf16.msra.mxu0 0
    %142 = vmatprep.subr.bf16.mxu0 0
    %143 = vmatpush1.bf16.msra.mxu0 0
    %144 = vmatprep.subr.bf16.mxu0 0
    %145 = vmatpush1.bf16.msra.mxu0 0
    %146 = vmatprep.subr.bf16.mxu0 0
    %147 = vmatpush1.bf16.msra.mxu0 0
    %148 = vmatprep.mubr.bf16.mxu0 0
    %149 = vmatmul.mubr.bf16.gmra.mrb[0].mxu0 %v66
    %v150 = vpop.f32.mrb[0].mxu0
    %v151 = vadd.f32 0.0, %v150
    %v152 = vpop.f32.mrb[0].mxu0
    %v153 = vpop.f32.mrb[0].mxu0
    %v154 = vadd.f32 0.0, %v153
    %v155 = vpop.f32.mrb[0].mxu0
    %156 = vdwg.mxu0
    %v157 = vadd.f32 %v42, %v151
    %v158 = vadd.f32 %v43, %v154
    %159 = vst [vmem:[#allocation2] sm:$0xff] %v157
    %160 = vst [vmem:[#allocation2 + $0x8] sm:$0xff] %v158
    // Predicated region
    $region22: #{multi_head_classifier_fwd.1} parent=1 // pred_check
      %p161 = pneg %p29
    $region23: #{multi_head_classifier_fwd.1} parent=1 // pred_check_branch
      %163 = sbr.rel (%p161) target = $region25
    $region24: #{multi_head_classifier_fwd.1} parent=1 // pred_region
      %v164 = vld [vmem:[#allocation2] sm:$0xff]
      %v165 = vld [vmem:[#allocation2 + $0x8] sm:$0xff]
      %166 = vst [vmem:[%s3] sm:$0xff] %v164
      %167 = vst [vmem:[%s3 + $0x8] sm:$0xff] %v165
    $region25: #{multi_head_classifier_fwd.1} parent=1 // pred_fallthru
      _
    // Predicated region
    $region26: #{multi_head_classifier_fwd.1} parent=1 // pred_check
      _
    $region27: #{multi_head_classifier_fwd.1} parent=1 // pred_check_branch
      %169 = sbr.rel (0) target = $region29
    $region28: #{multi_head_classifier_fwd.1} parent=1 // pred_region
      _
    $region29: #{multi_head_classifier_fwd.1} parent=1 // pred_fallthru
      _
    // Predicated region
    $region30: #{multi_head_classifier_fwd.1} parent=1 // pred_check
      _
    $region31: #{multi_head_classifier_fwd.1} parent=1 // pred_check_branch
      %171 = sbr.rel (0) target = $region33
    $region32: #{multi_head_classifier_fwd.1} parent=1 // pred_region
      _
    $region33: #{multi_head_classifier_fwd.1} parent=1 // pred_fallthru
      _
    %172 = vsyncpa [#allocation4], 1

</llo_original>
